<compile_context>
chip_gen: v6e
topology: v6e:2x2x1
jax: 0.10.0
libtpu: 0.0.40
codegen_flags: <defaults>
</compile_context>

<pallas_src>
import jax
import jax.numpy as jnp
from jax.experimental import pallas as pl
from jax.experimental.pallas import tpu as pltpu


def _conv_mm_kernel(p_ref, w_ref, o_ref):
    # p_ref: (K_pad, M_pad)   im2col patches for one batch element (lane-dense)
    # w_ref: (Cout, K_pad)    weight with bias folded in as an extra column
    # o_ref: (Cout, M_pad)    lane-dense output (unmasked 2x128-lane stores)
    o_ref[...] = jnp.dot(
        w_ref[...], p_ref[...], preferred_element_type=jnp.float32
    ).astype(o_ref.dtype)


def conv2d_pallas(x_nchw, w_oihw, bias):
    """Conv2d, stride=1, padding=0 (VALID). x_nchw: (N, Cin, H, W) float32."""
    N, Cin, H, W = x_nchw.shape
    Cout, _, KH, KW = w_oihw.shape
    OH, OW = H - KH + 1, W - KW + 1
    OHW = OH * OW                       # 196
    K = Cin * KH * KW                   # 27, feature order = (cin, kh, kw)
    K_b = K + 1                         # +1 ones-row for the folded bias
    K_pad = ((K_b + 7) // 8) * 8        # 32  (sublane multiple of 8)
    M_pad = ((OHW + 127) // 128) * 128  # 256 (lane multiple of 128)
    dtype = x_nchw.dtype

    # ---- wrapper im2col, built directly in (N, K, OHW) — no transpose ------
    slices = [x_nchw[:, :, kh:kh + OH, kw:kw + OW]
              for kh in range(KH) for kw in range(KW)]           # each (N,Cin,OH,OW)
    patches = jnp.stack(slices, axis=2).reshape(N, K, OHW)       # (N, 27, 196)
    ones_row = jnp.ones((N, 1, OHW), dtype=dtype)                # bias row
    patches = jnp.concatenate([patches, ones_row], axis=1)       # (N, 28, 196)
    patches = jnp.pad(patches,
                      ((0, 0), (0, K_pad - K_b), (0, M_pad - OHW)))  # (N, 32, 256)

    # ---- weight (Cout, K) in matching (cin, kh, kw) order; bias as last col -
    w_mat = w_oihw.reshape(Cout, K)                              # no transpose
    w_mat = jnp.concatenate([w_mat, bias.reshape(Cout, 1)], axis=1)  # (6, 28)
    w_mat = jnp.pad(w_mat, ((0, 0), (0, K_pad - K_b))).astype(dtype)  # (6, 32)

    flops = 2 * N * Cout * K_pad * M_pad
    bytes_accessed = 4 * (N * K_pad * M_pad + Cout * K_pad + N * Cout * M_pad)

    out = pl.pallas_call(
        _conv_mm_kernel,
        out_shape=jax.ShapeDtypeStruct((N, Cout, M_pad), dtype),
        grid=(N,),
        in_specs=[
            pl.BlockSpec((None, K_pad, M_pad), lambda n: (n, 0, 0)),
            pl.BlockSpec((Cout, K_pad), lambda n: (0, 0)),
        ],
        out_specs=pl.BlockSpec((None, Cout, M_pad), lambda n: (n, 0, 0)),
        compiler_params=pltpu.CompilerParams(
            dimension_semantics=("parallel",)),
        cost_estimate=pl.CostEstimate(flops=flops, transcendentals=0,
                                      bytes_accessed=bytes_accessed),
    )(patches, w_mat)                                            # (N, Cout, 256)

    # Slice off the lane padding and reshape to NCHW — no transpose needed.
    return out[:, :, :OHW].reshape(N, Cout, OH, OW)


def init_params(key):
    """Deterministic Conv2d(3, 6, 3) params, PyTorch-style uniform init."""
    Cout, Cin, KH, KW = 6, 3, 3, 3
    fan_in = Cin * KH * KW
    bound = 1.0 / (fan_in ** 0.5)
    kw_key, kb_key = jax.random.split(key)
    weight = jax.random.uniform(kw_key, (Cout, Cin, KH, KW),
                                minval=-bound, maxval=bound, dtype=jnp.float32)
    bias = jax.random.uniform(kb_key, (Cout,),
                              minval=-bound, maxval=bound, dtype=jnp.float32)
    return weight, bias


if __name__ == "__main__":
    key = jax.random.PRNGKey(0)
    k_x, k_p = jax.random.split(key)

    # Small NCHW input consistent with Conv2d(in_channels=3, ...)
    x = jax.random.normal(k_x, (2, 3, 16, 16), dtype=jnp.float32)
    weight, bias = init_params(k_p)

    out = jax.block_until_ready(conv2d_pallas(x, weight, bias))
    assert out.shape == (2, 6, 14, 14), out.shape

    # Cross-check against XLA's reference convolution.
    ref = jax.lax.conv_general_dilated(
        x, weight, window_strides=(1, 1), padding="VALID",
        dimension_numbers=("NCHW", "OIHW", "NCHW"))
    ref = ref + bias[None, :, None, None]
    assert jnp.allclose(out, ref, atol=1e-4, rtol=1e-4), \
        float(jnp.max(jnp.abs(out - ref)))

    print("KERNEL_OK")
</pallas_src>

<mosaic_0001>
module attributes {stable_mosaic.version = 11 : i64} {
  func.func @_conv_mm_kernel(%arg0: i32, %arg1: memref<1x32x256xf32, #tpu.memory_space<vmem>>, %arg2: memref<6x32xf32, #tpu.memory_space<vmem>>, %arg3: memref<1x6x256xf32, #tpu.memory_space<vmem>>) attributes {dimension_semantics = [#tpu.dimension_semantics<parallel>], iteration_bounds = array<i64: 2>, scalar_prefetch = 0 : i64, scratch_operands = 0 : i64, tpu.core_type = #tpu.core_type<tc>, window_params = [{transform_indices = @transform_0, window_bounds = array<i64: 1, 32, 256>}, {pipeline_mode = #tpu.pipeline_mode<synchronous>, transform_indices = @transform_1, window_bounds = array<i64: 6, 32>}, {transform_indices = @transform_2, window_bounds = array<i64: 1, 6, 256>}]} {
    %c0 = arith.constant 0 : index
    %c0_0 = arith.constant 0 : index
    %0 = vector.load %arg2[%c0, %c0_0] : memref<6x32xf32, #tpu.memory_space<vmem>>, vector<6x32xf32>
    %c0_1 = arith.constant 0 : index
    %c0_2 = arith.constant 0 : index
    %c0_3 = arith.constant 0 : index
    %1 = vector.load %arg1[%c0_1, %c0_2, %c0_3] : memref<1x32x256xf32, #tpu.memory_space<vmem>>, vector<1x32x256xf32>
    %2 = vector.shape_cast %1 : vector<1x32x256xf32> to vector<32x256xf32>
    %cst = arith.constant dense<0.000000e+00> : vector<6x256xf32>
    %3 = tpu.matmul %0, %2, %cst {dimension_numbers = #tpu.dot_dimension_numbers<[1], [0], [0], [1], [0, 0, 1, 1], [], []>} : vector<6x32xf32>, vector<32x256xf32>, vector<6x256xf32> -> vector<6x256xf32>
    %c0_4 = arith.constant 0 : index
    %c0_5 = arith.constant 0 : index
    %c0_6 = arith.constant 0 : index
    %4 = vector.load %arg3[%c0_4, %c0_5, %c0_6] : memref<1x6x256xf32, #tpu.memory_space<vmem>>, vector<1x6x256xf32>
    %5 = vector.shape_cast %4 : vector<1x6x256xf32> to vector<6x256xf32>
    %6 = vector.shape_cast %3 : vector<6x256xf32> to vector<1x6x256xf32>
    tpu.vector_store %arg3[%c0_4, %c0_5, %c0_6], %6 {strides = array<i32>} : memref<1x6x256xf32, #tpu.memory_space<vmem>>, vector<1x6x256xf32>,
    return
  }
  func.func @transform_0(%arg0: i32) -> (i32, i32, i32) {
    %c0_i32 = arith.constant 0 : i32
    %c0_i32_0 = arith.constant 0 : i32
    %c0_i32_1 = arith.constant 0 : i32
    return %arg0, %c0_i32, %c0_i32_0 : i32, i32, i32
  }
  func.func @transform_1(%arg0: i32) -> (i32, i32) {
    %c0_i32 = arith.constant 0 : i32
    %c0_i32_0 = arith.constant 0 : i32
    %c0_i32_1 = arith.constant 0 : i32
    return %c0_i32, %c0_i32_0 : i32, i32
  }
  func.func @transform_2(%arg0: i32) -> (i32, i32, i32) {
    %c0_i32 = arith.constant 0 : i32
    %c0_i32_0 = arith.constant 0 : i32
    %c0_i32_1 = arith.constant 0 : i32
    return %arg0, %c0_i32, %c0_i32_0 : i32, i32, i32
  }
}

</mosaic_0001>

<llo_original>
// kernel: tpu_custom_call.1
$region0: #{tpu_custom_call.1}
  #allocation0 [shape = 'u32[]', space=smem, size = 0x4, offset = 0x4, fixed_abs, tag = 'smem constant byte address 0x4 - core index']
  #allocation1 [shape = 'u32[144,128]{1,0:T(1,128)}', space=vmem, size = 0x12000, scoped, tag = 'internal scratch']
  %s0 = inlined_call_operand.hbm [shape: f32[2,32,256], index: 0, kind: input, shape index: {}]
  %s1 = inlined_call_operand.hbm [shape: f32[6,32], index: 1, kind: input, shape index: {}]
  %s2 = inlined_call_operand.vmem [shape: f32[2,6,256], index: 2, kind: output, shape index: {}]
  %s3 = sld [smem:[#allocation0]]
  $region49: #{tpu_custom_call.1} parent=0
    _
  %s5 = ssub.s32 1, %s3
  %s6 = scalar_select 0, %s5, %s3
  $region1: #{tpu_custom_call.1} parent=0
    #allocation2 [shape = 'u8[65536]{0}', space=vmem, size = 0x10000, scoped, tag = 'input window, operand 0']
    #allocation3 [shape = 's32[2]{0}', space=sflag, size = 0x8, scoped, tag = 'scoped memory for tpu_custom_call.1']
    #allocation4 [shape = 'u8[4096]{0}', space=vmem, size = 0x1000, scoped, tag = 'input window, operand 1, single buffered']
    #allocation5 [shape = 's32[1]{0}', space=sflag, size = 0x4, scoped, tag = 'scoped memory for tpu_custom_call.1']
    %7 = vsyncpa [#allocation3], 0
    %s8 = scalar_lea.sflag [#allocation3], 1
    %9 = vsyncpa %s8, 0
    %10 = vsyncpa [#allocation5], 0
    loop: start=0, step=1, limit=4
    $region2: #{tpu_custom_call.1} parent=1 // loop_pre_header
      _
    $region3: #{tpu_custom_call.1} parent=1 // loop_header
      %s12 = sphi 0, %s16
      %p13 = scmp.ge.s32.totalorder %s12, 4
      %s22 = sphi 0, %s24
      %s25 = sphi 0, %s22
      %s26 = sphi 0, %s25
      %s42 = sphi 0, %s26
      %s46 = sphi 0, %s46
      %s48 = sphi 0, %s46
      %s49 = sphi 0, %s48
      %s63 = sphi 0, %s49
      %s69 = sphi 0, %s71
      %s72 = sphi 0, %s69
      %s73 = sphi 0, %s72
      %s89 = sphi 0, %s73
    $region4: #{tpu_custom_call.1} parent=1 // loop_header_branch
      %15 = sbr.rel (%p13) target = $region8
    $region5: #{tpu_custom_call.1} parent=1 // loop_body
      %s17 = ssub.s32 %s12, 1
      %s18 = ssub.s32 %s12, 2
      %s19 = sadd.s32 %s12, 1
      %s20 = ssub.s32 %s12, %s19
      %p21 = scmp.eq.s32.totalorder %s20, 0
      %s23 = sadd.s32 %s22, 1
      %s24 = scalar_select %p21, %s22, %s23
      %p27 = pneg %p21
      %p28 = scmp.eq.s32.totalorder %s12, 1
      %p29 = por %p27, %p28
      %p30 = scmp.ne.s32.totalorder %s22, %s25
      %p31 = scmp.eq.s32.totalorder %s12, 0
      %p32 = por %p30, %p31
      %p33 = scmp.ne.s32.totalorder %s22, %s25
      %p34 = scmp.eq.s32.totalorder %s17, 1
      %p35 = por %p33, %p34
      %p36 = scmp.ne.s32.totalorder %s25, %s26
      %p37 = scmp.eq.s32.totalorder %s17, 0
      %p38 = por %p36, %p37
      %p39 = scmp.ne.s32.totalorder %s25, %s26
      %p40 = scmp.eq.s32.totalorder %s18, 1
      %p41 = por %p39, %p40
      %p43 = scmp.ne.s32.totalorder %s26, %s42
      %p44 = scmp.eq.s32.totalorder %s18, 0
      %p45 = por %p43, %p44
      %s47 = sadd.s32 %s46, 1
      %p50 = scmp.eq.s32.totalorder %s12, 1
      %p51 = scmp.ne.s32.totalorder %s46, %s48
      %p52 = scmp.eq.s32.totalorder %s12, 0
      %p53 = por %p51, %p52
      %p54 = scmp.ne.s32.totalorder %s46, %s48
      %p55 = scmp.eq.s32.totalorder %s17, 1
      %p56 = por %p54, %p55
      %p57 = scmp.ne.s32.totalorder %s48, %s49
      %p58 = scmp.eq.s32.totalorder %s17, 0
      %p59 = por %p57, %p58
      %p60 = scmp.ne.s32.totalorder %s48, %s49
      %p61 = scmp.eq.s32.totalorder %s18, 1
      %p62 = por %p60, %p61
      %p64 = scmp.ne.s32.totalorder %s49, %s63
      %p65 = scmp.eq.s32.totalorder %s18, 0
      %p66 = por %p64, %p65
      %s67 = ssub.s32 %s12, %s19
      %p68 = scmp.eq.s32.totalorder %s67, 0
      %s70 = sadd.s32 %s69, 1
      %s71 = scalar_select %p68, %s69, %s70
      %p74 = pneg %p68
      %p75 = scmp.eq.s32.totalorder %s12, 1
      %p76 = por %p74, %p75
      %p77 = scmp.ne.s32.totalorder %s69, %s72
      %p78 = scmp.eq.s32.totalorder %s12, 0
      %p79 = por %p77, %p78
      %p80 = scmp.ne.s32.totalorder %s69, %s72
      %p81 = scmp.eq.s32.totalorder %s17, 1
      %p82 = por %p80, %p81
      %p83 = scmp.ne.s32.totalorder %s72, %s73
      %p84 = scmp.eq.s32.totalorder %s17, 0
      %p85 = por %p83, %p84
      %p86 = scmp.ne.s32.totalorder %s72, %s73
      %p87 = scmp.eq.s32.totalorder %s18, 1
      %p88 = por %p86, %p87
      %p90 = scmp.ne.s32.totalorder %s73, %s89
      %p91 = scmp.eq.s32.totalorder %s18, 0
      %p92 = por %p90, %p91
      %p93 = scmp.le.s32.totalorder 1, %s12
      %p94 = scmp.lt.s32.totalorder %s12, 3
      %p95 = pnand %p93, %p94
      %p96 = pneg %p95
      // Predicated region
      $region9: #{tpu_custom_call.1} parent=5 // pred_check
        _
      $region10: #{tpu_custom_call.1} parent=5 // pred_check_branch
        %98 = sbr.rel (%p95) target = $region12
      $region11: #{tpu_custom_call.1} parent=5 // pred_region
        %s99 = ssub.s32 %s12, 1
        // Predicated region
        $region13: #{tpu_custom_call.1} parent=11 // pred_check
          %p100 = pneg %p59
        $region14: #{tpu_custom_call.1} parent=11 // pred_check_branch
          %102 = sbr.rel (%p100) target = $region16
        $region15: #{tpu_custom_call.1} parent=11 // pred_region
          %s104 = ssub.s32 128, 128
          %105 = vsyncadd [#allocation5], %s104
          %s107 = sshll.u32 [#allocation4], 4
          %s108 = int_to_ptr.vmem [resolvable:$true] %s107
          %110 = dma.hbm_to_vmem [thread:$0]  %s1, 128, %s108, [#allocation5]
        $region16: #{tpu_custom_call.1} parent=11 // pred_fallthru
          _
      $region12: #{tpu_custom_call.1} parent=5 // pred_fallthru
        _
      %p111 = scmp.lt.s32.totalorder %s12, 2
      // Predicated region
      $region17: #{tpu_custom_call.1} parent=5 // pred_check
        %p112 = pneg %p111
      $region18: #{tpu_custom_call.1} parent=5 // pred_check_branch
        %114 = sbr.rel (%p112) target = $region20
      $region19: #{tpu_custom_call.1} parent=5 // pred_region
        // Predicated region
        $region21: #{tpu_custom_call.1} parent=19 // pred_check
          %p115 = pneg %p32
        $region22: #{tpu_custom_call.1} parent=19 // pred_check_branch
          %117 = sbr.rel (%p115) target = $region24
        $region23: #{tpu_custom_call.1} parent=19 // pred_region
          %s118 = sand.u32 %s22, 1
          %s119 = scalar_lea.sflag [#allocation3], %s118
          %s120 = sand.u32 %s22, 1
          %s121 = smul.addr %s120, 64
          %s122 = scalar_lea.vmem [#allocation2], %s121
          %s124 = ssub.s32 1024, 1024
          %125 = vsyncadd %s119, %s124
          %s126 = smul.addr %s12, 8
          %s127 = smul.addr %s126, 128
          %s128 = scalar_lea.hbm %s0, %s127
          %s129 = sshll.u32 %s122, 4
          %s130 = int_to_ptr.vmem [resolvable:$true] %s129
          %135 = dma.hbm_to_vmem [thread:$0]  %s128, 1024, %s130, %s119, 256, 256, 16
        $region24: #{tpu_custom_call.1} parent=19 // pred_fallthru
          _
      $region20: #{tpu_custom_call.1} parent=5 // pred_fallthru
        _
      %p136 = scmp.le.s32.totalorder 1, %s12
      %p137 = scmp.lt.s32.totalorder %s12, 3
      %p138 = pnand %p136, %p137
      %p139 = pneg %p138
      // Predicated region
      $region25: #{tpu_custom_call.1} parent=5 // pred_check
        _
      $region26: #{tpu_custom_call.1} parent=5 // pred_check_branch
        %141 = sbr.rel (%p138) target = $region28
      $region27: #{tpu_custom_call.1} parent=5 // pred_region
        %s142 = ssub.s32 %s12, 1
        %s143 = sand.u32 %s25, 1
        %s144 = scalar_lea.sflag [#allocation3], %s143
        %s145 = sand.u32 %s25, 1
        %s146 = smul.addr %s145, 64
        %s147 = scalar_lea.vmem [#allocation2], %s146
        // Predicated region
        $region29: #{tpu_custom_call.1} parent=27 // pred_check
          %p148 = pneg %p38
        $region30: #{tpu_custom_call.1} parent=27 // pred_check_branch
          %150 = sbr.rel (%p148) target = $region32
        $region31: #{tpu_custom_call.1} parent=27 // pred_region
          %151 = dma.done %s144, 1024
        $region32: #{tpu_custom_call.1} parent=27 // pred_fallthru
          _
        // Predicated region
        $region33: #{tpu_custom_call.1} parent=27 // pred_check
          %p152 = pneg %p59
        $region34: #{tpu_custom_call.1} parent=27 // pred_check_branch
          %154 = sbr.rel (%p152) target = $region36
        $region35: #{tpu_custom_call.1} parent=27 // pred_region
          %155 = dma.done [#allocation5], 128
        $region36: #{tpu_custom_call.1} parent=27 // pred_fallthru
          _
        %s156 = sand.u32 %s25, 1
        %s157 = scalar_lea.sflag [#allocation3], %s156
        %s158 = sand.u32 %s25, 1
        %s159 = smul.addr %s158, 64
        %s160 = scalar_lea.vmem [#allocation2], %s159
        %p161 = pneg %p38
        %p162 = pneg %p35
        %p163 = pneg %p59
        %p164 = pneg %p56
        %p165 = pneg %p85
        %p166 = pneg %p82
        %p167 = scmp.lt.s32.totalorder %s17, 1
        %s168 = scalar_select %p167, %s17, 1
        %s169 = smul.addr %s168, 2
        %s170 = smul.addr %s169, 8
        %s171 = scalar_lea.vmem %s2, %s170
        %p172 = scmp.lt.s32.totalorder %s17, 1
        %s173 = scalar_select %p172, %s17, 1
        %s174 = smul.addr %s173, 2
        %s175 = smul.addr %s174, 8
        %s176 = scalar_lea.vmem %s2, %s175
        %v177 = vld [vmem:[#allocation4] sm:$0x3f]
        %v178 = vld [vmem:[%s147] sm:$0xff]
        %v179 = vld [vmem:[%s147 + $0x8] sm:$0xff]
        %v180 = vld [vmem:[%s147 + $0x10] sm:$0xff]
        %v181 = vld [vmem:[%s147 + $0x18] sm:$0xff]
        %v182 = vld [vmem:[%s147 + $0x20] sm:$0xff]
        %v183 = vld [vmem:[%s147 + $0x28] sm:$0xff]
        %v184 = vld [vmem:[%s147 + $0x30] sm:$0xff]
        %v185 = vld [vmem:[%s147 + $0x38] sm:$0xff]
        %vm186 = vcmask 261120
        %v188 = vsel %vm186, %v177, 0
        %190 = vmatprep.subr.mxu0 0.0
        %191 = vmatpush1.msra.mxu0 0.0
        %192 = vmatprep.subr.mxu0 0.0
        %193 = vmatpush1.msra.mxu0 0.0
        %194 = vmatprep.subr.mxu0 0.0
        %195 = vmatpush1.msra.mxu0 0.0
        %196 = vmatprep.subr.mxu0 0.0
        %197 = vmatpush1.msra.mxu0 0.0
        %198 = vmatprep.subr.mxu0 0.0
        %199 = vmatpush1.msra.mxu0 0.0
        %200 = vmatprep.subr.mxu0 0.0
        %201 = vmatpush1.msra.mxu0 0.0
        %202 = vmatprep.subr.mxu0 0.0
        %203 = vmatpush1.msra.mxu0 0.0
        %204 = vmatprep.subr.mxu0 0.0
        %205 = vmatpush1.msra.mxu0 0.0
        %206 = vmatprep.subr.mxu0 0.0
        %207 = vmatpush1.msra.mxu0 0.0
        %208 = vmatprep.subr.mxu0 0.0
        %209 = vmatpush1.msra.mxu0 0.0
        %210 = vmatprep.subr.mxu0 0.0
        %211 = vmatpush1.msra.mxu0 0.0
        %212 = vmatprep.subr.mxu0 0.0
        %213 = vmatpush1.msra.mxu0 0.0
        %214 = vmatprep.subr.mxu0 %v185
        %215 = vmatpush1.msra.mxu0 %v184
        %216 = vmatprep.subr.mxu0 %v183
        %217 = vmatpush1.msra.mxu0 %v182
        %218 = vmatprep.subr.mxu0 %v181
        %219 = vmatpush1.msra.mxu0 %v180
        %220 = vmatprep.subr.mxu0 %v179
        %221 = vmatpush1.msra.mxu0 %v178
        %222 = vmatprep.subr.mxu0 0.0
        %223 = vmatpush2.msra.mxu0 0.0
        %224 = vmatprep.subr.mxu0 0.0
        %225 = vmatpush2.msra.mxu0 0.0
        %226 = vmatprep.subr.mxu0 0.0
        %227 = vmatpush2.msra.mxu0 0.0
        %228 = vmatprep.subr.mxu0 0.0
        %229 = vmatpush2.msra.mxu0 0.0
        %230 = vmatprep.subr.mxu0 0.0
        %231 = vmatpush2.msra.mxu0 0.0
        %232 = vmatprep.subr.mxu0 0.0
        %233 = vmatpush2.msra.mxu0 0.0
        %234 = vmatprep.subr.mxu0 0.0
        %235 = vmatpush2.msra.mxu0 0.0
        %236 = vmatprep.subr.mxu0 0.0
        %237 = vmatpush2.msra.mxu0 0.0
        %238 = vmatprep.subr.mxu0 0.0
        %239 = vmatpush2.msra.mxu0 0.0
        %240 = vmatprep.subr.mxu0 0.0
        %241 = vmatpush2.msra.mxu0 0.0
        %242 = vmatprep.subr.mxu0 0.0
        %243 = vmatpush2.msra.mxu0 0.0
        %244 = vmatprep.subr.mxu0 0.0
        %245 = vmatpush2.msra.mxu0 0.0
        %246 = vmatprep.subr.mxu0 0.0
        %247 = vmatpush2.msra.mxu0 0.0
        %248 = vmatprep.subr.mxu0 0.0
        %249 = vmatpush2.msra.mxu0 0.0
        %250 = vmatprep.subr.mxu0 0.0
        %251 = vmatpush2.msra.mxu0 0.0
        %252 = vmatprep.subr.mxu0 0.0
        %253 = vmatpush2.msra.mxu0 0.0
        %254 = vmatprep.mubr.f32.mxu0 0.0
        %255 = vmatmul.mubr.f32.gmra.mxu0 %v188
        %v256 = vpop.f32.mrf.mxu0
        %v257 = vadd.f32 0.0, %v256
        %v258 = vpop.f32.mrf.mxu0
        %v259 = vadd.f32 0.0, %v258
        %260 = vdwg.mxu0
        %261 = vst [vmem:[%s176] sm:$0x3f] %v257
        %262 = vst [vmem:[%s176 + $0x8] sm:$0x3f] %v259
        %p263 = scmp.lt.s32.totalorder %s17, 1
        %s264 = scalar_select %p263, %s17, 1
        %s265 = smul.addr %s264, 2
        %s266 = smul.addr %s265, 8
        %s267 = scalar_lea.vmem %s2, %s266
        // Predicated region
        $region37: #{tpu_custom_call.1} parent=27 // pred_check
          %p268 = pneg %p82
        $region38: #{tpu_custom_call.1} parent=27 // pred_check_branch
          %270 = sbr.rel (%p268) target = $region40
        $region39: #{tpu_custom_call.1} parent=27 // pred_region
          _
        $region40: #{tpu_custom_call.1} parent=27 // pred_fallthru
          _
      $region28: #{tpu_custom_call.1} parent=5 // pred_fallthru
        _
      %p271 = scmp.le.s32.totalorder 2, %s12
      // Predicated region
      $region41: #{tpu_custom_call.1} parent=5 // pred_check
        %p272 = pneg %p271
      $region42: #{tpu_custom_call.1} parent=5 // pred_check_branch
        %274 = sbr.rel (%p272) target = $region44
      $region43: #{tpu_custom_call.1} parent=5 // pred_region
        %s275 = ssub.s32 %s12, 2
        // Predicated region
        $region45: #{tpu_custom_call.1} parent=43 // pred_check
          %p276 = pneg %p88
        $region46: #{tpu_custom_call.1} parent=43 // pred_check_branch
          %278 = sbr.rel (%p276) target = $region48
        $region47: #{tpu_custom_call.1} parent=43 // pred_region
          %p279 = scmp.lt.s32.totalorder %s18, 1
          %s280 = scalar_select %p279, %s18, 1
          %s281 = smul.addr %s280, 2
          %s282 = smul.addr %s281, 8
          %s283 = scalar_lea.vmem %s2, %s282
        $region48: #{tpu_custom_call.1} parent=43 // pred_fallthru
          _
      $region44: #{tpu_custom_call.1} parent=5 // pred_fallthru
        _
    $region6: #{tpu_custom_call.1} parent=1 // loop_footer
      %s16 = sadd.s32 1, %s12
    $region7: #{tpu_custom_call.1} parent=1 // loop_footer_branch
      %11 = sbr.rel target = $region3
    $region8: #{tpu_custom_call.1} parent=1 // loop_exit
      _
    %284 = vsyncpa [#allocation3], 1
    %s285 = scalar_lea.sflag [#allocation3], 1
    %286 = vsyncpa %s285, 1
    %287 = vsyncpa [#allocation5], 1

</llo_original>
